<compile_context>
chip_gen: v6e
topology: v6e:2x2x1
jax: 0.10.0
libtpu: 0.0.40
codegen_flags: <defaults>
</compile_context>

<pallas_src>
import functools
import math

import jax
import jax.numpy as jnp
from jax.experimental import pallas as pl
from jax.experimental.pallas import tpu as pltpu


def _round_up(x, m):
    return ((x + m - 1) // m) * m


# ---------------------------------------------------------------------------
# Kernel 1: per-node projection   x @ [att_src | att_tgt]  ->  [tile_N, 2K]
# ---------------------------------------------------------------------------
def _project_kernel(x_ref, att_ref, proj_ref):
    # x_ref: [tile_N, F_in], att_ref: [F_in, 2K].  2K is tiny so the MXU is
    # underutilized, but this stage touches only O(N*F) bytes (not O(E*F)).
    proj_ref[...] = jnp.dot(
        x_ref[...], att_ref[...], preferred_element_type=jnp.float32
    ).astype(proj_ref.dtype)


# ---------------------------------------------------------------------------
# Kernel 2: edge combine  relu(ps + pt) + multi-head readout (edges on lanes)
# ---------------------------------------------------------------------------
def _combine_kernel(ps_ref, pt_ref, out_ref, *, readout, K):
    # ps_ref/pt_ref: [K, tile_E];  out_ref: [K, tile_E] ('cat') or [1, tile_E].
    s = ps_ref[...].astype(jnp.float32) + pt_ref[...].astype(jnp.float32)
    s = jnp.maximum(s, 0.0)  # signal_lift_activation = relu (applied after the sum)
    if readout == "cat":
        out_ref[...] = s.astype(out_ref.dtype)
    elif readout == "sum":
        out_ref[...] = jnp.sum(s, axis=0, keepdims=True).astype(out_ref.dtype)
    elif readout == "avg":
        out_ref[...] = (jnp.sum(s, axis=0, keepdims=True) * (1.0 / K)).astype(out_ref.dtype)
    elif readout == "max":
        out_ref[...] = jnp.max(s, axis=0, keepdims=True).astype(out_ref.dtype)
    else:
        raise ValueError("Invalid signal_lift_readout value.")


@functools.partial(jax.jit, static_argnames=("readout",))
def multi_head_lift_layer(node_signal, edge_index, att, readout="sum"):
    """Forward pass of MultiHeadLiftLayer (eval mode: dropout is identity).

    node_signal: [N, F_in] float32
    edge_index : [2, E]    int32   (source row, target row)
    att        : [2*F_in, K] float32  (K per-head attention vectors, packed)
    returns    : ([E, K] if readout=='cat' else [E, 1], edge_index)
    """
    if readout not in ("cat", "sum", "avg", "max"):
        raise ValueError("Invalid signal_lift_readout value.")

    N, F_in = node_signal.shape
    two_f, K = att.shape
    assert two_f == 2 * F_in, (two_f, F_in)
    E = edge_index.shape[1]
    out_rows = K if readout == "cat" else 1
    dtype = node_signal.dtype

    # Pack per-head attention vectors: [2F, K] -> [F, 2K]  (src half | tgt half).
    att_packed = jnp.concatenate([att[:F_in, :], att[F_in:, :]], axis=1)

    # --- Stage 1: node projection (Pallas, tiled over N, megacore-parallel) ---
    tile_n = min(1024, _round_up(N, 8))
    proj = pl.pallas_call(
        _project_kernel,
        out_shape=jax.ShapeDtypeStruct((N, 2 * K), jnp.float32),
        grid=(pl.cdiv(N, tile_n),),
        in_specs=[
            pl.BlockSpec((tile_n, F_in), lambda i: (i, 0)),
            pl.BlockSpec((F_in, 2 * K), lambda i: (0, 0)),  # att stays resident
        ],
        out_specs=pl.BlockSpec((tile_n, 2 * K), lambda i: (i, 0)),
        compiler_params=pltpu.CompilerParams(dimension_semantics=("parallel",)),
        cost_estimate=pl.CostEstimate(
            flops=2 * N * F_in * 2 * K,
            transcendentals=0,
            bytes_accessed=4 * (N * F_in + F_in * 2 * K + N * 2 * K),
        ),
    )(node_signal.astype(jnp.float32), att_packed.astype(jnp.float32))

    # --- Glue: data-dependent edge gather on the tiny [N, K] projections. ---
    # NOTE: jnp.take clamps out-of-bounds edge indices on TPU (PyTorch would error).
    src = edge_index[0]
    tgt = edge_index[1]
    ps_t = jnp.take(proj[:, :K], src, axis=0).T  # [K, E]  (edges on lane axis)
    pt_t = jnp.take(proj[:, K:], tgt, axis=0).T  # [K, E]

    # --- Stage 2: fused add + relu + readout (Pallas, tiled over E, parallel) ---
    # Lane-dense tiles: tile_e is a multiple of 128; per-tile VMEM (2 inputs x 2
    # buffers x K x tile_e x 4B + output) is only a few hundred KiB even at
    # tile_e=8192, safe on v7x's 64 MiB VMEM and large enough to amortize the
    # ~0.35 us per-grid-step overhead on v5e's single TensorCore.
    tile_e = min(8192, _round_up(E, 128))
    kernel = functools.partial(_combine_kernel, readout=readout, K=K)
    out_t = pl.pallas_call(
        kernel,
        out_shape=jax.ShapeDtypeStruct((out_rows, E), dtype),
        grid=(pl.cdiv(E, tile_e),),
        in_specs=[
            pl.BlockSpec((K, tile_e), lambda i: (0, i)),
            pl.BlockSpec((K, tile_e), lambda i: (0, i)),
        ],
        out_specs=pl.BlockSpec((out_rows, tile_e), lambda i: (0, i)),
        compiler_params=pltpu.CompilerParams(dimension_semantics=("parallel",)),
        cost_estimate=pl.CostEstimate(
            flops=3 * E * K,
            transcendentals=0,
            bytes_accessed=4 * (2 * E * K + E * out_rows),
        ),
    )(ps_t, pt_t)

    combined = out_t.T  # [E, K] for 'cat'; [E, 1] otherwise (pure reshape)
    # TODO(synk): signal_lift_dropout is identity at inference (training=False).
    return combined, edge_index


def _reference(node_signal, edge_index, att, readout):
    """Pure-JAX reference mirroring the PyTorch module semantics exactly."""
    src, tgt = edge_index[0], edge_index[1]
    stacked = jnp.concatenate([node_signal[src], node_signal[tgt]], axis=1)  # [E, 2F]
    heads = [jax.nn.relu(stacked @ att[:, k : k + 1]) for k in range(att.shape[1])]
    if readout == "cat":
        return jnp.concatenate(heads, axis=1)
    stk = jnp.stack(heads, axis=2)  # [E, 1, K]
    if readout == "sum":
        return stk.sum(axis=2)
    if readout == "avg":
        return stk.mean(axis=2)
    if readout == "max":
        return stk.max(axis=2)
    raise ValueError(readout)


def init_attention(key, F_in, K):
    """Xavier-uniform init with gain=calculate_gain('relu')=sqrt(2), per head.

    Each head's att has shape (2*F_in, 1): fan_in=1, fan_out=2*F_in.
    """
    gain = math.sqrt(2.0)
    bound = gain * math.sqrt(6.0 / (1 + 2 * F_in))
    keys = jax.random.split(key, K)
    cols = [
        jax.random.uniform(k, (2 * F_in, 1), jnp.float32, -bound, bound) for k in keys
    ]
    return jnp.concatenate(cols, axis=1)  # [2*F_in, K]


if __name__ == "__main__":
    key = jax.random.PRNGKey(0)
    k_x, k_e, k_att = jax.random.split(key, 3)

    N = 10      # number of nodes
    F_in = 8    # node feature dim
    K = 3       # attention heads
    E = 12      # number of edges

    node_signal = jax.random.normal(k_x, (N, F_in), jnp.float32)
    edge_index = jax.random.randint(k_e, (2, E), 0, N, jnp.int32)
    att = init_attention(k_att, F_in, K)

    for readout in ("sum", "cat", "avg", "max"):
        out, _graph = multi_head_lift_layer(node_signal, edge_index, att, readout=readout)
        out = jax.block_until_ready(out)
        ref = _reference(node_signal, edge_index, att, readout)
        assert out.shape == ref.shape, (readout, out.shape, ref.shape)
        assert jnp.allclose(out, ref, atol=1e-5, rtol=1e-5), f"mismatch vs reference ({readout})"

    print("KERNEL_OK")
</pallas_src>

<mosaic_0001>
module attributes {stable_mosaic.version = 11 : i64} {
  func.func @_project_kernel(%arg0: i32, %arg1: memref<16x8xf32, #tpu.memory_space<vmem>>, %arg2: memref<8x6xf32, #tpu.memory_space<vmem>>, %arg3: memref<16x6xf32, #tpu.memory_space<vmem>>) attributes {dimension_semantics = [#tpu.dimension_semantics<parallel>], iteration_bounds = array<i64: 1>, scalar_prefetch = 0 : i64, scratch_operands = 0 : i64, tpu.core_type = #tpu.core_type<tc>, window_params = [{transform_indices = @transform_0, window_bounds = array<i64: 16, 8>}, {pipeline_mode = #tpu.pipeline_mode<synchronous>, transform_indices = @transform_1, window_bounds = array<i64: 8, 6>}, {transform_indices = @transform_2, window_bounds = array<i64: 16, 6>}]} {
    %c0 = arith.constant 0 : index
    %c0_0 = arith.constant 0 : index
    %0 = vector.load %arg1[%c0, %c0_0] : memref<16x8xf32, #tpu.memory_space<vmem>>, vector<16x8xf32>
    %c0_1 = arith.constant 0 : index
    %c0_2 = arith.constant 0 : index
    %1 = vector.load %arg2[%c0_1, %c0_2] : memref<8x6xf32, #tpu.memory_space<vmem>>, vector<8x6xf32>
    %cst = arith.constant dense<0.000000e+00> : vector<16x6xf32>
    %2 = tpu.matmul %0, %1, %cst {dimension_numbers = #tpu.dot_dimension_numbers<[1], [0], [0], [1], [0, 0, 1, 1], [], []>} : vector<16x8xf32>, vector<8x6xf32>, vector<16x6xf32> -> vector<16x6xf32>
    %c0_3 = arith.constant 0 : index
    %c0_4 = arith.constant 0 : index
    %3 = vector.load %arg3[%c0_3, %c0_4] : memref<16x6xf32, #tpu.memory_space<vmem>>, vector<16x6xf32>
    tpu.vector_store %arg3[%c0_3, %c0_4], %2 {strides = array<i32>} : memref<16x6xf32, #tpu.memory_space<vmem>>, vector<16x6xf32>,
    return
  }
  func.func @transform_0(%arg0: i32) -> (i32, i32) {
    %c0_i32 = arith.constant 0 : i32
    %c0_i32_0 = arith.constant 0 : i32
    return %arg0, %c0_i32 : i32, i32
  }
  func.func @transform_1(%arg0: i32) -> (i32, i32) {
    %c0_i32 = arith.constant 0 : i32
    %c0_i32_0 = arith.constant 0 : i32
    %c0_i32_1 = arith.constant 0 : i32
    return %c0_i32, %c0_i32_0 : i32, i32
  }
  func.func @transform_2(%arg0: i32) -> (i32, i32) {
    %c0_i32 = arith.constant 0 : i32
    %c0_i32_0 = arith.constant 0 : i32
    return %arg0, %c0_i32 : i32, i32
  }
}

module attributes {stable_mosaic.version = 11 : i64} {
  func.func @_combine_kernel(%arg0: i32, %arg1: memref<3x128xf32, #tpu.memory_space<vmem>>, %arg2: memref<3x128xf32, #tpu.memory_space<vmem>>, %arg3: memref<1x128xf32, #tpu.memory_space<vmem>>) attributes {dimension_semantics = [#tpu.dimension_semantics<parallel>], iteration_bounds = array<i64: 1>, scalar_prefetch = 0 : i64, scratch_operands = 0 : i64, tpu.core_type = #tpu.core_type<tc>, window_params = [{transform_indices = @transform_0, window_bounds = array<i64: 3, 128>}, {transform_indices = @transform_1, window_bounds = array<i64: 3, 128>}, {transform_indices = @transform_2, window_bounds = array<i64: 1, 128>}]} {
    %c0 = arith.constant 0 : index
    %c0_0 = arith.constant 0 : index
    %0 = vector.load %arg1[%c0, %c0_0] : memref<3x128xf32, #tpu.memory_space<vmem>>, vector<3x128xf32>
    %c0_1 = arith.constant 0 : index
    %c0_2 = arith.constant 0 : index
    %1 = vector.load %arg2[%c0_1, %c0_2] : memref<3x128xf32, #tpu.memory_space<vmem>>, vector<3x128xf32>
    %2 = arith.addf %0, %1 : vector<3x128xf32>
    %cst = arith.constant 0.000000e+00 : f32
    %3 = vector.broadcast %cst : f32 to vector<3x128xf32>
    %4 = arith.maximumf %2, %3 : vector<3x128xf32>
    %cst_3 = arith.constant dense<0.000000e+00> : vector<128xf32>
    %5 = vector.multi_reduction <add>, %4, %cst_3 [0] : vector<3x128xf32> to vector<128xf32>
    %6 = vector.shape_cast %5 : vector<128xf32> to vector<1x128xf32>
    %c0_4 = arith.constant 0 : index
    %c0_5 = arith.constant 0 : index
    %7 = vector.load %arg3[%c0_4, %c0_5] : memref<1x128xf32, #tpu.memory_space<vmem>>, vector<1x128xf32>
    tpu.vector_store %arg3[%c0_4, %c0_5], %6 {strides = array<i32>} : memref<1x128xf32, #tpu.memory_space<vmem>>, vector<1x128xf32>,
    return
  }
  func.func @transform_0(%arg0: i32) -> (i32, i32) {
    %c0_i32 = arith.constant 0 : i32
    %c0_i32_0 = arith.constant 0 : i32
    return %c0_i32, %arg0 : i32, i32
  }
  func.func @transform_1(%arg0: i32) -> (i32, i32) {
    %c0_i32 = arith.constant 0 : i32
    %c0_i32_0 = arith.constant 0 : i32
    return %c0_i32, %arg0 : i32, i32
  }
  func.func @transform_2(%arg0: i32) -> (i32, i32) {
    %c0_i32 = arith.constant 0 : i32
    %c0_i32_0 = arith.constant 0 : i32
    return %c0_i32, %arg0 : i32, i32
  }
}

</mosaic_0001>

<llo_original>
// kernel: multi_head_lift_layer.2
$region0: #{multi_head_lift_layer.2}
  #allocation0 [shape = 'u32[]', space=smem, size = 0x4, offset = 0x4, fixed_abs, tag = 'smem constant byte address 0x4 - core index']
  #allocation1 [shape = 'u32[144,128]{1,0:T(1,128)}', space=vmem, size = 0x12000, scoped, tag = 'internal scratch']
  %s0 = inlined_call_operand.vmem [shape: f32[10,8], index: 0, kind: input, shape index: {}]
  %s1 = inlined_call_operand.vmem [shape: f32[8,6], index: 1, kind: input, shape index: {}]
  %s2 = inlined_call_operand.vmem [shape: f32[10,6], index: 2, kind: output, shape index: {}]
  %s3 = sld [smem:[#allocation0]]
  $region18: #{multi_head_lift_layer.2} parent=0
    _
  %s5 = ssub.s32 1, %s3
  %s6 = scalar_select 0, %s5, %s3
  // Predicated region
  $region2: #{multi_head_lift_layer.2} parent=0 // pred_check
    _
  $region3: #{multi_head_lift_layer.2} parent=0 // pred_check_branch
    %8 = sbr.rel (0) target = $region5
  $region4: #{multi_head_lift_layer.2} parent=0 // pred_region
    _
  $region5: #{multi_head_lift_layer.2} parent=0 // pred_fallthru
    _
  // Predicated region
  $region6: #{multi_head_lift_layer.2} parent=0 // pred_check
    _
  $region7: #{multi_head_lift_layer.2} parent=0 // pred_check_branch
    %10 = sbr.rel (0) target = $region9
  $region8: #{multi_head_lift_layer.2} parent=0 // pred_region
    _
  $region9: #{multi_head_lift_layer.2} parent=0 // pred_fallthru
    _
  %v11 = vld [vmem:[%s0] sm:$0xff]
  %v12 = vld [vmem:[%s0 + $0x8] sm:$0xff]
  %v13 = vld [vmem:[%s1] sm:$0xff]
  %vm14 = vcmask 64512
  %v16 = vsel %vm14, %v11, 0
  %v19 = vsel %vm14, %v12, 0
  %21 = vmatprep.subr.mxu0 0.0
  %22 = vmatpush1.msra.mxu0 0.0
  %23 = vmatprep.subr.mxu0 0.0
  %24 = vmatpush1.msra.mxu0 0.0
  %25 = vmatprep.subr.mxu0 0.0
  %26 = vmatpush1.msra.mxu0 0.0
  %27 = vmatprep.subr.mxu0 0.0
  %28 = vmatpush1.msra.mxu0 0.0
  %29 = vmatprep.subr.mxu0 0.0
  %30 = vmatpush1.msra.mxu0 0.0
  %31 = vmatprep.subr.mxu0 0.0
  %32 = vmatpush1.msra.mxu0 0.0
  %33 = vmatprep.subr.mxu0 0.0
  %34 = vmatpush1.msra.mxu0 0.0
  %35 = vmatprep.subr.mxu0 0.0
  %36 = vmatpush1.msra.mxu0 0.0
  %37 = vmatprep.subr.mxu0 0.0
  %38 = vmatpush1.msra.mxu0 0.0
  %39 = vmatprep.subr.mxu0 0.0
  %40 = vmatpush1.msra.mxu0 0.0
  %41 = vmatprep.subr.mxu0 0.0
  %42 = vmatpush1.msra.mxu0 0.0
  %43 = vmatprep.subr.mxu0 0.0
  %44 = vmatpush1.msra.mxu0 0.0
  %45 = vmatprep.subr.mxu0 0.0
  %46 = vmatpush1.msra.mxu0 0.0
  %47 = vmatprep.subr.mxu0 0.0
  %48 = vmatpush1.msra.mxu0 0.0
  %49 = vmatprep.subr.mxu0 0.0
  %50 = vmatpush1.msra.mxu0 0.0
  %51 = vmatprep.subr.mxu0 0.0
  %52 = vmatpush1.msra.mxu0 %v13
  %53 = vmatprep.subr.mxu0 0.0
  %54 = vmatpush2.msra.mxu0 0.0
  %55 = vmatprep.subr.mxu0 0.0
  %56 = vmatpush2.msra.mxu0 0.0
  %57 = vmatprep.subr.mxu0 0.0
  %58 = vmatpush2.msra.mxu0 0.0
  %59 = vmatprep.subr.mxu0 0.0
  %60 = vmatpush2.msra.mxu0 0.0
  %61 = vmatprep.subr.mxu0 0.0
  %62 = vmatpush2.msra.mxu0 0.0
  %63 = vmatprep.subr.mxu0 0.0
  %64 = vmatpush2.msra.mxu0 0.0
  %65 = vmatprep.subr.mxu0 0.0
  %66 = vmatpush2.msra.mxu0 0.0
  %67 = vmatprep.subr.mxu0 0.0
  %68 = vmatpush2.msra.mxu0 0.0
  %69 = vmatprep.subr.mxu0 0.0
  %70 = vmatpush2.msra.mxu0 0.0
  %71 = vmatprep.subr.mxu0 0.0
  %72 = vmatpush2.msra.mxu0 0.0
  %73 = vmatprep.subr.mxu0 0.0
  %74 = vmatpush2.msra.mxu0 0.0
  %75 = vmatprep.subr.mxu0 0.0
  %76 = vmatpush2.msra.mxu0 0.0
  %77 = vmatprep.subr.mxu0 0.0
  %78 = vmatpush2.msra.mxu0 0.0
  %79 = vmatprep.subr.mxu0 0.0
  %80 = vmatpush2.msra.mxu0 0.0
  %81 = vmatprep.subr.mxu0 0.0
  %82 = vmatpush2.msra.mxu0 0.0
  %83 = vmatprep.subr.mxu0 0.0
  %84 = vmatpush2.msra.mxu0 0.0
  %85 = vmatprep.mubr.f32.mxu0 0.0
  %86 = vmatmul.mubr.f32.gmra.mxu0 %v16
  %v87 = vpop.f32.mrf.mxu0
  %v88 = vadd.f32 0.0, %v87
  %v89 = vpop.f32.mrf.mxu0
  %90 = vmatprep.mubr.f32.mxu0 0.0
  %91 = vmatmul.mubr.f32.gmra.mxu0 %v19
  %v92 = vpop.f32.mrf.mxu0
  %v93 = vadd.f32 0.0, %v92
  %v94 = vpop.f32.mrf.mxu0
  %95 = vdwg.mxu0
  %vm96 = vcmask 48128
  %97 = vst.msk [vmem:[%s2] sm:$0xff] %vm96, %v88
  %98 = vst.msk [vmem:[%s2 + $0x8] sm:$0xff] %vm96, %v93
  // Predicated region
  $region10: #{multi_head_lift_layer.2} parent=0 // pred_check
    _
  $region11: #{multi_head_lift_layer.2} parent=0 // pred_check_branch
    %100 = sbr.rel (0) target = $region13
  $region12: #{multi_head_lift_layer.2} parent=0 // pred_region
    _
  $region13: #{multi_head_lift_layer.2} parent=0 // pred_fallthru
    _
  // Predicated region
  $region14: #{multi_head_lift_layer.2} parent=0 // pred_check
    _
  $region15: #{multi_head_lift_layer.2} parent=0 // pred_check_branch
    %102 = sbr.rel (0) target = $region17
  $region16: #{multi_head_lift_layer.2} parent=0 // pred_region
    _
  $region17: #{multi_head_lift_layer.2} parent=0 // pred_fallthru
    _

// kernel: multi_head_lift_layer.3
$region0: #{multi_head_lift_layer.3}
  #allocation0 [shape = 'u32[]', space=smem, size = 0x4, offset = 0x4, fixed_abs, tag = 'smem constant byte address 0x4 - core index']
  #allocation1 [shape = 'u32[144,128]{1,0:T(1,128)}', space=vmem, size = 0x12000, scoped, tag = 'internal scratch']
  %s0 = inlined_call_operand.vmem [shape: f32[3,12], index: 0, kind: input, shape index: {}]
  %s1 = inlined_call_operand.vmem [shape: f32[3,12], index: 1, kind: input, shape index: {}]
  %s2 = inlined_call_operand.hbm [shape: f32[1,12], index: 2, kind: output, shape index: {}]
  %s3 = sld [smem:[#allocation0]]
  $region18: #{multi_head_lift_layer.3} parent=0
    _
  %s5 = ssub.s32 1, %s3
  %s6 = scalar_select 0, %s5, %s3
  $region1: #{multi_head_lift_layer.3} parent=0
    #allocation2 [shape = 'u8[512]{0}', space=vmem, size = 0x400, scoped, tag = 'output window, operand 0, single buffered']
    #allocation3 [shape = 's32[1]{0}', space=sflag, size = 0x4, scoped, tag = 'scoped memory for multi_head_lift_layer.3']
    %7 = vsyncpa [#allocation3], 0
    // Predicated region
    $region2: #{multi_head_lift_layer.3} parent=1 // pred_check
      _
    $region3: #{multi_head_lift_layer.3} parent=1 // pred_check_branch
      %9 = sbr.rel (0) target = $region5
    $region4: #{multi_head_lift_layer.3} parent=1 // pred_region
      _
    $region5: #{multi_head_lift_layer.3} parent=1 // pred_fallthru
      _
    // Predicated region
    $region6: #{multi_head_lift_layer.3} parent=1 // pred_check
      _
    $region7: #{multi_head_lift_layer.3} parent=1 // pred_check_branch
      %11 = sbr.rel (0) target = $region9
    $region8: #{multi_head_lift_layer.3} parent=1 // pred_region
      _
    $region9: #{multi_head_lift_layer.3} parent=1 // pred_fallthru
      _
    %v12 = vld [vmem:[%s0] sm:$0x7]
    %v13 = vld [vmem:[%s1] sm:$0x7]
    %v14 = vadd.f32 %v12, %v13
    %v15 = vmax.f32 %v14, 0.0
    %vm16 = vcmask 1042432
    %v17 = vsel %vm16, %v15, 0.0
    %v18 = vrot.slane %v17, 4
    %v19 = vadd.f32 %v17, %v18
    %v20 = vrot.slane %v19, 2
    %v21 = vadd.f32 %v19, %v20
    %v22 = vrot.slane %v21, 1
    %v23 = vadd.f32 %v21, %v22
    %24 = vst [vmem:[#allocation2] sm:$0x1] %v23
    // Predicated region
    $region10: #{multi_head_lift_layer.3} parent=1 // pred_check
      _
    $region11: #{multi_head_lift_layer.3} parent=1 // pred_check_branch
      %26 = sbr.rel (0) target = $region13
    $region12: #{multi_head_lift_layer.3} parent=1 // pred_region
      %s28 = ssub.s32 16, 16
      %29 = vsyncadd [#allocation3], %s28
      %s31 = sshll.u32 [#allocation2], 4
      %s32 = int_to_ptr.vmem [resolvable:$true] %s31
      %34 = dma.vmem_to_hbm [thread:$0]  %s32, 16, %s2, [#allocation3]
    $region13: #{multi_head_lift_layer.3} parent=1 // pred_fallthru
      _
    // Predicated region
    $region14: #{multi_head_lift_layer.3} parent=1 // pred_check
      _
    $region15: #{multi_head_lift_layer.3} parent=1 // pred_check_branch
      %36 = sbr.rel (0) target = $region17
    $region16: #{multi_head_lift_layer.3} parent=1 // pred_region
      %37 = dma.done [#allocation3], 16
    $region17: #{multi_head_lift_layer.3} parent=1 // pred_fallthru
      _
    %38 = vsyncpa [#allocation3], 1

</llo_original>
